<compile_context>
chip_gen: v6e
topology: v6e:2x2x1
jax: 0.10.0
libtpu: 0.0.40
codegen_flags: <defaults>
</compile_context>

<pallas_src>
import jax
import jax.numpy as jnp
from jax.experimental import pallas as pl
from jax.experimental.pallas import tpu as pltpu


def _pick_lane(total: int, max_lane: int) -> int:
    """Largest multiple-of-128 divisor of `total` that is <= max_lane.

    Assumes total % 128 == 0 and total > 0.
    """
    q = total // 128
    max_mult = max(1, min(q, max_lane // 128))
    for m in range(max_mult, 0, -1):
        if q % m == 0:
            return 128 * m
    return 128


def times_n(
    x: jax.Array,
    n: float,
    *,
    max_lane: int = 4096,
    target_block_bytes: int = 2 << 20,   # ~2 MiB per input block
    single_block_bytes: int = 1 << 20,   # fast-path threshold (per buffer)
):
    """Compute n * x with a Pallas TPU kernel. Works for any-rank input."""
    orig_shape = x.shape
    # Match `n * x` promotion semantics (Python scalar is weakly typed).
    out_dtype = jnp.result_type(x.dtype, type(n))
    total = int(x.size)

    if total == 0:
        return jnp.zeros(orig_shape, out_dtype)

    in_item = jnp.dtype(x.dtype).itemsize
    out_item = jnp.dtype(out_dtype).itemsize
    # Sublane packing multiple of the narrowest dtype involved.
    packing = max(8, 32 // min(in_item, out_item))

    flat = x.reshape(-1)

    if total % 128 == 0:
        # Exact lane-dense 2D view: no pad, no final slice (no extra HBM passes).
        lane = _pick_lane(total, max_lane)
        rows = total // lane
        padded = total
    else:
        # Truly ragged total: fall back to a padded (rows, lane) slab.
        # TODO(synk): a masked in-kernel store into an unpadded flat output would
        # remove these two extra HBM passes for totals not divisible by 128.
        lane = max(128, min(1024, pl.cdiv(total, 128) * 128))
        rows = pl.cdiv(total, lane)
        padded = rows * lane
        flat = jnp.pad(flat, (0, padded - total))

    x2 = flat.reshape(rows, lane)

    if total * max(in_item, out_item) <= single_block_bytes:
        # Single block == full array dims (no (8,128) constraint, no pipeline overhead).
        block_rows = rows
    else:
        # Byte-sized blocks, aligned to the sublane packing.
        br = max(packing, (target_block_bytes // (lane * in_item)) // packing * packing)
        # Keep >= ~4 grid steps so v7x can shard the "parallel" axis over both TCs.
        quarter = max(packing, (rows // (4 * packing)) * packing)
        br = min(br, quarter)
        block_rows = min(br, (rows // packing) * packing)

    grid = (pl.cdiv(rows, block_rows),)

    def _kernel(x_ref, o_ref):
        # n is a compile-time immediate; compute and cast on store.
        o_ref[...] = (x_ref[...] * n).astype(o_ref.dtype)

    # Dtype-exact VMEM budget: double-buffered in + out blocks, plus headroom.
    db_bytes = 2 * block_rows * lane * (in_item + out_item)
    vmem_limit = min(32 << 20, max(16 << 20, db_bytes + (2 << 20)))

    out = pl.pallas_call(
        _kernel,
        out_shape=jax.ShapeDtypeStruct((rows, lane), out_dtype),
        grid=grid,
        in_specs=[pl.BlockSpec((block_rows, lane), lambda i: (i, 0))],
        out_specs=pl.BlockSpec((block_rows, lane), lambda i: (i, 0)),
        compiler_params=pltpu.CompilerParams(
            dimension_semantics=("parallel",),
            vmem_limit_bytes=vmem_limit,
        ),
        cost_estimate=pl.CostEstimate(
            flops=total,
            transcendentals=0,
            bytes_accessed=total * (in_item + out_item),
        ),
    )(x2)

    if padded != total:
        out = out.reshape(-1)[:total]
    return out.reshape(orig_shape)


if __name__ == "__main__":
    key = jax.random.PRNGKey(0)
    # Small NCHW-ish tensor consistent with what the module might see.
    x = jax.random.normal(key, (2, 4, 16, 16), dtype=jnp.float32)
    n = 3.5  # deterministic "parameter" from __init__

    y = times_n(x, n)
    jax.block_until_ready(y)

    # Correctness check against reference semantics: n * x
    ref = n * x
    assert y.shape == ref.shape and y.dtype == ref.dtype
    assert jnp.allclose(y, ref, atol=1e-6, rtol=1e-6)

    # Exercise the exact-reshape, multi-block tiled path (total % 128 == 0).
    x_big = jax.random.normal(jax.random.PRNGKey(1), (8, 8, 64, 128), dtype=jnp.float32)
    y_big = times_n(x_big, n)
    jax.block_until_ready(y_big)
    assert jnp.allclose(y_big, n * x_big, atol=1e-6, rtol=1e-6)

    # Exercise the ragged fallback path (total not divisible by 128).
    x_rag = jax.random.normal(jax.random.PRNGKey(2), (3, 7, 123, 37), dtype=jnp.float32)
    y_rag = times_n(x_rag, n)
    jax.block_until_ready(y_rag)
    assert jnp.allclose(y_rag, n * x_rag, atol=1e-6, rtol=1e-6)

    print("KERNEL_OK")
</pallas_src>

<mosaic_0001>
module attributes {stable_mosaic.version = 11 : i64} {
  func.func @_kernel(%arg0: i32, %arg1: memref<1x2048xf32, #tpu.memory_space<vmem>>, %arg2: memref<1x2048xf32, #tpu.memory_space<vmem>>) attributes {dimension_semantics = [#tpu.dimension_semantics<parallel>], iteration_bounds = array<i64: 1>, scalar_prefetch = 0 : i64, scratch_operands = 0 : i64, tpu.core_type = #tpu.core_type<tc>, window_params = [{transform_indices = @transform_0, window_bounds = array<i64: 1, 2048>}, {transform_indices = @transform_1, window_bounds = array<i64: 1, 2048>}]} {
    %c0 = arith.constant 0 : index
    %c0_0 = arith.constant 0 : index
    %0 = vector.load %arg1[%c0, %c0_0] : memref<1x2048xf32, #tpu.memory_space<vmem>>, vector<1x2048xf32>
    %cst = arith.constant 3.500000e+00 : f32
    %1 = vector.broadcast %cst : f32 to vector<1x2048xf32>
    %2 = arith.mulf %0, %1 : vector<1x2048xf32>
    %c0_1 = arith.constant 0 : index
    %c0_2 = arith.constant 0 : index
    %3 = vector.load %arg2[%c0_1, %c0_2] : memref<1x2048xf32, #tpu.memory_space<vmem>>, vector<1x2048xf32>
    tpu.vector_store %arg2[%c0_1, %c0_2], %2 {strides = array<i32>} : memref<1x2048xf32, #tpu.memory_space<vmem>>, vector<1x2048xf32>,
    return
  }
  func.func @transform_0(%arg0: i32) -> (i32, i32) {
    %c0_i32 = arith.constant 0 : i32
    %c0_i32_0 = arith.constant 0 : i32
    return %arg0, %c0_i32 : i32, i32
  }
  func.func @transform_1(%arg0: i32) -> (i32, i32) {
    %c0_i32 = arith.constant 0 : i32
    %c0_i32_0 = arith.constant 0 : i32
    return %arg0, %c0_i32 : i32, i32
  }
}

</mosaic_0001>

<llo_original>
// kernel: tpu_custom_call.1
$region0: #{tpu_custom_call.1}
  #allocation0 [shape = 'u32[]', space=smem, size = 0x4, offset = 0x4, fixed_abs, tag = 'smem constant byte address 0x4 - core index']
  #allocation1 [shape = 'u32[144,128]{1,0:T(1,128)}', space=vmem, size = 0x12000, scoped, tag = 'internal scratch']
  %s0 = inlined_call_operand.hbm [shape: f32[1,2048], index: 0, kind: input, shape index: {}]
  %s1 = inlined_call_operand.hbm [shape: f32[1,2048], index: 1, kind: output, shape index: {}]
  %s2 = sld [smem:[#allocation0]]
  $region18: #{tpu_custom_call.1} parent=0
    _
  %s4 = ssub.s32 1, %s2
  %s5 = scalar_select 0, %s4, %s2
  $region1: #{tpu_custom_call.1} parent=0
    #allocation2 [shape = 'u8[8192]{0}', space=vmem, size = 0x2000, scoped, tag = 'input window, operand 0, single buffered']
    #allocation3 [shape = 's32[1]{0}', space=sflag, size = 0x4, scoped, tag = 'scoped memory for tpu_custom_call.1']
    #allocation4 [shape = 's32[1]{0}', space=sflag, size = 0x4, scoped, tag = 'scoped memory for tpu_custom_call.1']
    #allocation5 [shape = 'u8[8192]{0}', space=vmem, size = 0x2000, scoped, tag = 'output window, operand 0, single buffered']
    %6 = vsyncpa [#allocation3], 0
    %7 = vsyncpa [#allocation4], 0
    // Predicated region
    $region2: #{tpu_custom_call.1} parent=1 // pred_check
      _
    $region3: #{tpu_custom_call.1} parent=1 // pred_check_branch
      %9 = sbr.rel (0) target = $region5
    $region4: #{tpu_custom_call.1} parent=1 // pred_region
      %s11 = ssub.s32 256, 256
      %12 = vsyncadd [#allocation3], %s11
      %s14 = sshll.u32 [#allocation2], 4
      %s15 = int_to_ptr.vmem [resolvable:$true] %s14
      %17 = dma.hbm_to_vmem [thread:$0]  %s0, 256, %s15, [#allocation3]
    $region5: #{tpu_custom_call.1} parent=1 // pred_fallthru
      _
    // Predicated region
    $region6: #{tpu_custom_call.1} parent=1 // pred_check
      _
    $region7: #{tpu_custom_call.1} parent=1 // pred_check_branch
      %19 = sbr.rel (0) target = $region9
    $region8: #{tpu_custom_call.1} parent=1 // pred_region
      %20 = dma.done [#allocation3], 256
    $region9: #{tpu_custom_call.1} parent=1 // pred_fallthru
      _
    %v21 = vld [vmem:[#allocation2] sm:$0xff]
    %v22 = vld [vmem:[#allocation2 + $0x8] sm:$0xff]
    %v23 = vmul.f32 %v21, 3.5
    %v24 = vmul.f32 %v22, 3.5
    %25 = vst [vmem:[#allocation5] sm:$0xff] %v23
    %26 = vst [vmem:[#allocation5 + $0x8] sm:$0xff] %v24
    // Predicated region
    $region10: #{tpu_custom_call.1} parent=1 // pred_check
      _
    $region11: #{tpu_custom_call.1} parent=1 // pred_check_branch
      %28 = sbr.rel (0) target = $region13
    $region12: #{tpu_custom_call.1} parent=1 // pred_region
      %s30 = ssub.s32 256, 256
      %31 = vsyncadd [#allocation4], %s30
      %s33 = sshll.u32 [#allocation5], 4
      %s34 = int_to_ptr.vmem [resolvable:$true] %s33
      %36 = dma.vmem_to_hbm [thread:$0]  %s34, 256, %s1, [#allocation4]
    $region13: #{tpu_custom_call.1} parent=1 // pred_fallthru
      _
    // Predicated region
    $region14: #{tpu_custom_call.1} parent=1 // pred_check
      _
    $region15: #{tpu_custom_call.1} parent=1 // pred_check_branch
      %38 = sbr.rel (0) target = $region17
    $region16: #{tpu_custom_call.1} parent=1 // pred_region
      %39 = dma.done [#allocation4], 256
    $region17: #{tpu_custom_call.1} parent=1 // pred_fallthru
      _
    %40 = vsyncpa [#allocation3], 1
    %41 = vsyncpa [#allocation4], 1

</llo_original>
